<compile_context>
chip_gen: v5e
topology: v5e:2x2
jax: 0.10.0
libtpu: 0.0.40
codegen_flags: <defaults>
</compile_context>

<pallas_src>
import functools

import jax
import jax.numpy as jnp
from jax import lax
from jax.experimental import pallas as pl
from jax.experimental.pallas import tpu as pltpu

EPS = 1e-5


def _round_up(a, b):
    return -(-a // b) * b


def _basic_block_kernel(k1_chunks, k2_groups, tap2, N, P, Ho, Wo, S_out,
                        x1_ref, w1_ref, b1_ref, w2_ref, b2_ref, sc_ref,
                        o_ref, pad2_ref):
    L2 = (Ho + 2) * (Wo + 2)

    # ---- conv1 (+ BN1 scale pre-folded into w1): K-fused (P, 9*Cin) @ (9*Cin, S1) ----
    acc1 = None
    for c0, c1 in k1_chunks:                      # single chunk when 9*Cin <= 256
        part = jnp.dot(w1_ref[:, c0:c1], x1_ref[c0:c1, :],
                       preferred_element_type=jnp.float32)
        acc1 = part if acc1 is None else acc1 + part
    h1 = jnp.maximum(acc1 + b1_ref[...], 0.0)     # (P, S1p) f32, bias + ReLU only

    # ---- scatter valid conv1 rows into the flat, zero-padded conv2 slab ----
    # Full-slab zero is a single unmasked full-lane store; cheap at these sizes.
    # TODO(synk): at large feature maps zero only the 1-px halo + slack tail instead.
    pad2_ref[...] = jnp.zeros(pad2_ref.shape, pad2_ref.dtype)
    for n in range(N):
        for r in range(Ho):
            s0 = (n * Ho + r) * Wo                          # conv1 output row window
            d0 = n * L2 + (r + 1) * (Wo + 2) + 1            # interior of padded frame
            pad2_ref[:, d0:d0 + Wo] = h1[:, s0:s0 + Wo]

    # ---- conv2 (+ BN2 scale pre-folded into w2): tap-group fused matmuls ----
    # Per-tap ref slices of the flat slab; f32 pieces have P rows (tile-aligned concat).
    acc2 = None
    for t0, t1 in k2_groups:
        parts = [pad2_ref[:, tap2[t]:tap2[t] + S_out] for t in range(t0, t1)]
        xg = parts[0] if len(parts) == 1 else jnp.concatenate(parts, axis=0)
        part = jnp.dot(w2_ref[:, t0 * P:t1 * P], xg.astype(jnp.bfloat16),
                       preferred_element_type=jnp.float32)
        acc2 = part if acc2 is None else acc2 + part

    # ---- bias + residual add (shortcut prepared by the wrapper) + ReLU, all f32 ----
    o_ref[...] = jnp.maximum(acc2 + b2_ref[...] + sc_ref[...], 0.0)


def basic_block_forward(x_nchw, params, stride):
    N, Cin, H, W = x_nchw.shape
    P = params["w1"].shape[0]
    use_avgpool = (stride != 1) or (Cin != P)
    is_padding = (Cin != P)
    if is_padding:
        # torch pads the shortcut with a same-sized zero block -> planes == 2*in_planes
        assert P == 2 * Cin
    assert stride in (1, 2) and H % stride == 0 and W % stride == 0
    if use_avgpool:
        # floor-mode AvgPool2d(2) shortcut only matches the conv path for even dims / stride 2
        assert stride == 2 and H % 2 == 0 and W % 2 == 0
    Ho, Wo = H // stride, W // stride
    L2 = (Ho + 2) * (Wo + 2)
    S1p = _round_up(N * Ho * Wo, 128)            # conv1 output lanes (valid only, padded)
    S_out = _round_up(N * L2, 128)               # output slab lanes (multiple of 128)
    max_tap2 = 2 * (Wo + 2) + 2
    LSLAB = _round_up(S_out + max_tap2, 128)     # flat conv2 slab incl. slack

    x = x_nchw.astype(jnp.float32)
    x_pad = jnp.pad(x, ((0, 0), (0, 0), (1, 1), (1, 1)))

    # conv1 fused operand: rows ordered (tap, in_channel), lanes = (n, r, c) valid outputs.
    # This is an im2col of the block *input* (the smallest tensor in the block); building
    # it in the wrapper gives a single full-depth MXU matmul with no in-kernel relayout.
    taps = [(dy, dx) for dy in range(3) for dx in range(3)]
    cols = [x_pad[:, :, dy:dy + stride * Ho:stride, dx:dx + stride * Wo:stride]
            for (dy, dx) in taps]                                   # each (N, Cin, Ho, Wo)
    x1 = jnp.stack(cols, axis=0)                                    # (9, N, Cin, Ho, Wo)
    x1 = jnp.transpose(x1, (0, 2, 1, 3, 4)).reshape(9 * Cin, N * Ho * Wo)
    x1 = jnp.pad(x1, ((0, 0), (0, S1p - N * Ho * Wo))).astype(jnp.bfloat16)

    # conv2 tap lane offsets into the flat (Ho+2, Wo+2)-framed slab.
    tap2 = tuple(dy * (Wo + 2) + dx for dy in range(3) for dx in range(3))

    # K-chunking so each matmul's contraction depth is <= ~256 (v6e/v7x MXU depth).
    g1 = max(1, min(9, 256 // max(Cin, 1)))
    k1_chunks = tuple((t * Cin, min(t + g1, 9) * Cin) for t in range(0, 9, g1))
    g2 = max(1, min(9, 256 // max(P, 1)))
    if P % 8 != 0:
        g2 = 1           # sublane-aligned concat of f32 pieces needs P % 8 == 0
    k2_groups = tuple((t, min(t + g2, 9)) for t in range(0, 9, g2))

    # Fold BN scales into the conv weight rows (weight-side, one-time); only bias stays.
    def fold_scale(g, v):
        return (g / jnp.sqrt(v + EPS)).astype(jnp.float32)

    s1 = fold_scale(params["g1"], params["v1"])
    s2 = fold_scale(params["g2"], params["v2"])
    b1 = (params["b1"] - params["m1"] * s1).astype(jnp.float32).reshape(P, 1)
    b2 = (params["b2"] - params["m2"] * s2).astype(jnp.float32).reshape(P, 1)
    # weight columns ordered (dy, dx, in_channel) to match the fused operands above.
    w1 = params["w1"] * s1[:, None, None, None]                       # (P, Cin, 3, 3)
    w1 = jnp.transpose(w1, (0, 2, 3, 1)).reshape(P, 9 * Cin).astype(jnp.bfloat16)
    w2 = params["w2"] * s2[:, None, None, None]                       # (P, P, 3, 3)
    w2 = jnp.transpose(w2, (0, 2, 3, 1)).reshape(P, 9 * P).astype(jnp.bfloat16)

    # shortcut: AvgPool2d(2) in the wrapper, channel-zero-padded if needed, laid out in
    # the kernel's per-item (Ho+2, Wo+2) output slab frame (valid data top-left).
    if use_avgpool:
        sc = x.reshape(N, Cin, Ho, 2, Wo, 2).mean(axis=(3, 5))
    else:
        sc = x
    if is_padding:
        sc = jnp.concatenate([sc, jnp.zeros_like(sc)], axis=1)        # (N, P, Ho, Wo)
    sc = jnp.transpose(sc, (1, 0, 2, 3))                              # (P, N, Ho, Wo)
    sc = jnp.pad(sc, ((0, 0), (0, 0), (0, 2), (0, 2))).reshape(P, N * L2)
    sc = jnp.pad(sc, ((0, 0), (0, S_out - N * L2))).astype(jnp.float32)

    # Explicit VMEM budget: double-buffered inputs/outputs + scratch + headroom.
    def _nbytes(a):
        return int(a.size) * a.dtype.itemsize

    buf_bytes = sum(_nbytes(a) for a in (x1, w1, b1, w2, b2, sc)) + P * S_out * 4
    scratch_bytes = P * LSLAB * 4
    vmem_limit = int(min(2 * buf_bytes + scratch_bytes + (16 << 20), 100 << 20))

    kernel = functools.partial(_basic_block_kernel, k1_chunks, k2_groups, tap2,
                               N, P, Ho, Wo, S_out)

    # Single grid step: batch/spatial fused onto the lane axis; at these sizes per-step
    # overhead dominates.  Above ~1-2k output lanes one would tile the lane axis with a
    # grid dimension marked "parallel" (v7x dual-TC) and block sc/out/acc per tile.
    out_slab = pl.pallas_call(
        kernel,
        out_shape=jax.ShapeDtypeStruct((P, S_out), jnp.float32),
        grid=(1,),
        in_specs=[
            pl.BlockSpec(x1.shape, lambda i: (0, 0)),
            pl.BlockSpec(w1.shape, lambda i: (0, 0)),
            pl.BlockSpec((P, 1), lambda i: (0, 0)),
            pl.BlockSpec(w2.shape, lambda i: (0, 0)),
            pl.BlockSpec((P, 1), lambda i: (0, 0)),
            pl.BlockSpec((P, S_out), lambda i: (0, 0)),
        ],
        out_specs=pl.BlockSpec((P, S_out), lambda i: (0, 0)),
        scratch_shapes=[
            pltpu.VMEM((P, LSLAB), jnp.float32),   # flat, lane-dense conv2 input slab
        ],
        compiler_params=pltpu.CompilerParams(
            dimension_semantics=("arbitrary",),
            vmem_limit_bytes=vmem_limit),
    )(x1, w1, b1, w2, b2, sc)

    # drop junk columns/rows of the slab frame and return NCHW.
    out = out_slab[:, :N * L2].reshape(P, N, Ho + 2, Wo + 2)[:, :, :Ho, :Wo]
    return jnp.transpose(out, (1, 0, 2, 3))


def init_params(key, in_planes, planes):
    ks = jax.random.split(key, 10)
    return {
        "w1": 0.1 * jax.random.normal(ks[0], (planes, in_planes, 3, 3), jnp.float32),
        "w2": 0.1 * jax.random.normal(ks[1], (planes, planes, 3, 3), jnp.float32),
        "g1": jax.random.uniform(ks[2], (planes,), minval=0.5, maxval=1.5),
        "b1": 0.1 * jax.random.normal(ks[3], (planes,)),
        "m1": 0.1 * jax.random.normal(ks[4], (planes,)),
        "v1": jax.random.uniform(ks[5], (planes,), minval=0.5, maxval=1.5),
        "g2": jax.random.uniform(ks[6], (planes,), minval=0.5, maxval=1.5),
        "b2": 0.1 * jax.random.normal(ks[7], (planes,)),
        "m2": 0.1 * jax.random.normal(ks[8], (planes,)),
        "v2": jax.random.uniform(ks[9], (planes,), minval=0.5, maxval=1.5),
    }


def ref_forward(x, p, stride):
    """Pure-JAX/XLA reference matching the PyTorch forward (inference BN)."""
    def bn(y, g, b, m, v):
        s = g / jnp.sqrt(v + EPS)
        return y * s[None, :, None, None] + (b - m * s)[None, :, None, None]

    dn1 = lax.conv_dimension_numbers(x.shape, p["w1"].shape, ("NCHW", "OIHW", "NCHW"))
    y = lax.conv_general_dilated(x, p["w1"], (stride, stride), ((1, 1), (1, 1)),
                                 dimension_numbers=dn1,
                                 precision=lax.Precision.HIGHEST)
    y = jnp.maximum(bn(y, p["g1"], p["b1"], p["m1"], p["v1"]), 0.0)
    dn2 = lax.conv_dimension_numbers(y.shape, p["w2"].shape, ("NCHW", "OIHW", "NCHW"))
    y = lax.conv_general_dilated(y, p["w2"], (1, 1), ((1, 1), (1, 1)),
                                 dimension_numbers=dn2,
                                 precision=lax.Precision.HIGHEST)
    y = bn(y, p["g2"], p["b2"], p["m2"], p["v2"])

    N, Cin, H, W = x.shape
    P = p["w1"].shape[0]
    if stride != 1 or Cin != P:
        sc = x.reshape(N, Cin, H // 2, 2, W // 2, 2).mean(axis=(3, 5))
        if Cin != P:
            sc = jnp.concatenate([sc, jnp.zeros_like(sc)], axis=1)
    else:
        sc = x
    return jnp.maximum(y + sc, 0.0)


if __name__ == "__main__":
    key = jax.random.PRNGKey(0)
    kx, kp1, kp2 = jax.random.split(key, 3)

    # Config 1: downsampling block (stride=2, planes=2*in_planes) — exercises
    # conv1/bn1/relu, conv2/bn2, AvgPool2d(2) shortcut + channel zero-padding,
    # and the fused-tap conv2 matmul path (P % 8 == 0).
    N, Cin, H, W = 2, 4, 16, 16
    planes, stride = 8, 2
    x = jax.random.normal(kx, (N, Cin, H, W), jnp.float32)
    params = init_params(kp1, Cin, planes)
    out = basic_block_forward(x, params, stride)
    jax.block_until_ready(out)
    ref = ref_forward(x, params, stride)
    assert out.shape == ref.shape == (N, planes, H // stride, W // stride)
    assert float(jnp.max(jnp.abs(out - ref))) < 1e-1    # bf16 matmul inputs
    assert float(jnp.mean(jnp.abs(out - ref))) < 2e-2

    # Config 2: identity-shortcut block (stride=1, planes=in_planes).
    params2 = init_params(kp2, Cin, Cin)
    out2 = basic_block_forward(x, params2, 1)
    jax.block_until_ready(out2)
    ref2 = ref_forward(x, params2, 1)
    assert out2.shape == (N, Cin, H, W)
    assert float(jnp.max(jnp.abs(out2 - ref2))) < 1e-1
    assert float(jnp.mean(jnp.abs(out2 - ref2))) < 2e-2

    print("KERNEL_OK")
</pallas_src>

<mosaic_0001>
module attributes {stable_mosaic.version = 11 : i64} {
  func.func @_basic_block_kernel(%arg0: i32, %arg1: memref<36x128xbf16, #tpu.memory_space<vmem>>, %arg2: memref<8x36xbf16, #tpu.memory_space<vmem>>, %arg3: memref<8x1xf32, #tpu.memory_space<vmem>>, %arg4: memref<8x72xbf16, #tpu.memory_space<vmem>>, %arg5: memref<8x1xf32, #tpu.memory_space<vmem>>, %arg6: memref<8x256xf32, #tpu.memory_space<vmem>>, %arg7: memref<8x256xf32, #tpu.memory_space<vmem>>, %arg8: memref<8x384xf32, #tpu.memory_space<vmem>>) attributes {dimension_semantics = [#tpu.dimension_semantics<arbitrary>], iteration_bounds = array<i64: 1>, scalar_prefetch = 0 : i64, scratch_operands = 1 : i64, tpu.core_type = #tpu.core_type<tc>, window_params = [{pipeline_mode = #tpu.pipeline_mode<synchronous>, transform_indices = @transform_0, window_bounds = array<i64: 36, 128>}, {pipeline_mode = #tpu.pipeline_mode<synchronous>, transform_indices = @transform_1, window_bounds = array<i64: 8, 36>}, {pipeline_mode = #tpu.pipeline_mode<synchronous>, transform_indices = @transform_2, window_bounds = array<i64: 8, 1>}, {pipeline_mode = #tpu.pipeline_mode<synchronous>, transform_indices = @transform_3, window_bounds = array<i64: 8, 72>}, {pipeline_mode = #tpu.pipeline_mode<synchronous>, transform_indices = @transform_4, window_bounds = array<i64: 8, 1>}, {pipeline_mode = #tpu.pipeline_mode<synchronous>, transform_indices = @transform_5, window_bounds = array<i64: 8, 256>}, {pipeline_mode = #tpu.pipeline_mode<synchronous>, transform_indices = @transform_6, window_bounds = array<i64: 8, 256>}]} {
    %c0 = arith.constant 0 : index
    %c0_0 = arith.constant 0 : index
    %0 = vector.load %arg2[%c0, %c0_0] : memref<8x36xbf16, #tpu.memory_space<vmem>>, vector<8x36xbf16>
    %c0_1 = arith.constant 0 : index
    %c0_2 = arith.constant 0 : index
    %1 = vector.load %arg1[%c0_1, %c0_2] : memref<36x128xbf16, #tpu.memory_space<vmem>>, vector<36x128xbf16>
    %cst = arith.constant dense<0.000000e+00> : vector<8x128xf32>
    %2 = tpu.matmul %0, %1, %cst {dimension_numbers = #tpu.dot_dimension_numbers<[1], [0], [0], [1], [0, 0, 1, 1], [], []>} : vector<8x36xbf16>, vector<36x128xbf16>, vector<8x128xf32> -> vector<8x128xf32>
    %c0_3 = arith.constant 0 : index
    %c0_4 = arith.constant 0 : index
    %3 = vector.load %arg3[%c0_3, %c0_4] : memref<8x1xf32, #tpu.memory_space<vmem>>, vector<8x1xf32>
    %4 = vector.broadcast %3 : vector<8x1xf32> to vector<8x128xf32>
    %5 = arith.addf %2, %4 : vector<8x128xf32>
    %cst_5 = arith.constant 0.000000e+00 : f32
    %6 = vector.broadcast %cst_5 : f32 to vector<8x128xf32>
    %7 = arith.maximumf %5, %6 : vector<8x128xf32>
    %cst_6 = arith.constant 0.000000e+00 : f32
    %8 = vector.broadcast %cst_6 : f32 to vector<8x384xf32>
    %c0_7 = arith.constant 0 : index
    %c0_8 = arith.constant 0 : index
    %9 = vector.load %arg8[%c0_7, %c0_8] : memref<8x384xf32, #tpu.memory_space<vmem>>, vector<8x384xf32>
    tpu.vector_store %arg8[%c0_7, %c0_8], %8 {strides = array<i32>} : memref<8x384xf32, #tpu.memory_space<vmem>>, vector<8x384xf32>,
    %10 = vector.extract_strided_slice %7 {offsets = [0, 0], sizes = [8, 8], strides = [1, 1]} : vector<8x128xf32> to vector<8x8xf32>
    %c0_9 = arith.constant 0 : index
    %c11 = arith.constant 11 : index
    %11 = vector.load %arg8[%c0_9, %c11] : memref<8x384xf32, #tpu.memory_space<vmem>>, vector<8x8xf32>
    tpu.vector_store %arg8[%c0_9, %c11], %10 {strides = array<i32>} : memref<8x384xf32, #tpu.memory_space<vmem>>, vector<8x8xf32>,
    %12 = vector.extract_strided_slice %7 {offsets = [0, 8], sizes = [8, 8], strides = [1, 1]} : vector<8x128xf32> to vector<8x8xf32>
    %c0_10 = arith.constant 0 : index
    %c21 = arith.constant 21 : index
    %13 = vector.load %arg8[%c0_10, %c21] : memref<8x384xf32, #tpu.memory_space<vmem>>, vector<8x8xf32>
    tpu.vector_store %arg8[%c0_10, %c21], %12 {strides = array<i32>} : memref<8x384xf32, #tpu.memory_space<vmem>>, vector<8x8xf32>,
    %14 = vector.extract_strided_slice %7 {offsets = [0, 16], sizes = [8, 8], strides = [1, 1]} : vector<8x128xf32> to vector<8x8xf32>
    %c0_11 = arith.constant 0 : index
    %c31 = arith.constant 31 : index
    %15 = vector.load %arg8[%c0_11, %c31] : memref<8x384xf32, #tpu.memory_space<vmem>>, vector<8x8xf32>
    tpu.vector_store %arg8[%c0_11, %c31], %14 {strides = array<i32>} : memref<8x384xf32, #tpu.memory_space<vmem>>, vector<8x8xf32>,
    %16 = vector.extract_strided_slice %7 {offsets = [0, 24], sizes = [8, 8], strides = [1, 1]} : vector<8x128xf32> to vector<8x8xf32>
    %c0_12 = arith.constant 0 : index
    %c41 = arith.constant 41 : index
    %17 = vector.load %arg8[%c0_12, %c41] : memref<8x384xf32, #tpu.memory_space<vmem>>, vector<8x8xf32>
    tpu.vector_store %arg8[%c0_12, %c41], %16 {strides = array<i32>} : memref<8x384xf32, #tpu.memory_space<vmem>>, vector<8x8xf32>,
    %18 = vector.extract_strided_slice %7 {offsets = [0, 32], sizes = [8, 8], strides = [1, 1]} : vector<8x128xf32> to vector<8x8xf32>
    %c0_13 = arith.constant 0 : index
    %c51 = arith.constant 51 : index
    %19 = vector.load %arg8[%c0_13, %c51] : memref<8x384xf32, #tpu.memory_space<vmem>>, vector<8x8xf32>
    tpu.vector_store %arg8[%c0_13, %c51], %18 {strides = array<i32>} : memref<8x384xf32, #tpu.memory_space<vmem>>, vector<8x8xf32>,
    %20 = vector.extract_strided_slice %7 {offsets = [0, 40], sizes = [8, 8], strides = [1, 1]} : vector<8x128xf32> to vector<8x8xf32>
    %c0_14 = arith.constant 0 : index
    %c61 = arith.constant 61 : index
    %21 = vector.load %arg8[%c0_14, %c61] : memref<8x384xf32, #tpu.memory_space<vmem>>, vector<8x8xf32>
    tpu.vector_store %arg8[%c0_14, %c61], %20 {strides = array<i32>} : memref<8x384xf32, #tpu.memory_space<vmem>>, vector<8x8xf32>,
    %22 = vector.extract_strided_slice %7 {offsets = [0, 48], sizes = [8, 8], strides = [1, 1]} : vector<8x128xf32> to vector<8x8xf32>
    %c0_15 = arith.constant 0 : index
    %c71 = arith.constant 71 : index
    %23 = vector.load %arg8[%c0_15, %c71] : memref<8x384xf32, #tpu.memory_space<vmem>>, vector<8x8xf32>
    tpu.vector_store %arg8[%c0_15, %c71], %22 {strides = array<i32>} : memref<8x384xf32, #tpu.memory_space<vmem>>, vector<8x8xf32>,
    %24 = vector.extract_strided_slice %7 {offsets = [0, 56], sizes = [8, 8], strides = [1, 1]} : vector<8x128xf32> to vector<8x8xf32>
    %c0_16 = arith.constant 0 : index
    %c81 = arith.constant 81 : index
    %25 = vector.load %arg8[%c0_16, %c81] : memref<8x384xf32, #tpu.memory_space<vmem>>, vector<8x8xf32>
    tpu.vector_store %arg8[%c0_16, %c81], %24 {strides = array<i32>} : memref<8x384xf32, #tpu.memory_space<vmem>>, vector<8x8xf32>,
    %26 = vector.extract_strided_slice %7 {offsets = [0, 64], sizes = [8, 8], strides = [1, 1]} : vector<8x128xf32> to vector<8x8xf32>
    %c0_17 = arith.constant 0 : index
    %c111 = arith.constant 111 : index
    %27 = vector.load %arg8[%c0_17, %c111] : memref<8x384xf32, #tpu.memory_space<vmem>>, vector<8x8xf32>
    tpu.vector_store %arg8[%c0_17, %c111], %26 {strides = array<i32>} : memref<8x384xf32, #tpu.memory_space<vmem>>, vector<8x8xf32>,
    %28 = vector.extract_strided_slice %7 {offsets = [0, 72], sizes = [8, 8], strides = [1, 1]} : vector<8x128xf32> to vector<8x8xf32>
    %c0_18 = arith.constant 0 : index
    %c121 = arith.constant 121 : index
    %29 = vector.load %arg8[%c0_18, %c121] : memref<8x384xf32, #tpu.memory_space<vmem>>, vector<8x8xf32>
    tpu.vector_store %arg8[%c0_18, %c121], %28 {strides = array<i32>} : memref<8x384xf32, #tpu.memory_space<vmem>>, vector<8x8xf32>,
    %30 = vector.extract_strided_slice %7 {offsets = [0, 80], sizes = [8, 8], strides = [1, 1]} : vector<8x128xf32> to vector<8x8xf32>
    %c0_19 = arith.constant 0 : index
    %c131 = arith.constant 131 : index
    %31 = vector.load %arg8[%c0_19, %c131] : memref<8x384xf32, #tpu.memory_space<vmem>>, vector<8x8xf32>
    tpu.vector_store %arg8[%c0_19, %c131], %30 {strides = array<i32>} : memref<8x384xf32, #tpu.memory_space<vmem>>, vector<8x8xf32>,
    %32 = vector.extract_strided_slice %7 {offsets = [0, 88], sizes = [8, 8], strides = [1, 1]} : vector<8x128xf32> to vector<8x8xf32>
    %c0_20 = arith.constant 0 : index
    %c141 = arith.constant 141 : index
    %33 = vector.load %arg8[%c0_20, %c141] : memref<8x384xf32, #tpu.memory_space<vmem>>, vector<8x8xf32>
    tpu.vector_store %arg8[%c0_20, %c141], %32 {strides = array<i32>} : memref<8x384xf32, #tpu.memory_space<vmem>>, vector<8x8xf32>,
    %34 = vector.extract_strided_slice %7 {offsets = [0, 96], sizes = [8, 8], strides = [1, 1]} : vector<8x128xf32> to vector<8x8xf32>
    %c0_21 = arith.constant 0 : index
    %c151 = arith.constant 151 : index
    %35 = vector.load %arg8[%c0_21, %c151] : memref<8x384xf32, #tpu.memory_space<vmem>>, vector<8x8xf32>
    tpu.vector_store %arg8[%c0_21, %c151], %34 {strides = array<i32>} : memref<8x384xf32, #tpu.memory_space<vmem>>, vector<8x8xf32>,
    %36 = vector.extract_strided_slice %7 {offsets = [0, 104], sizes = [8, 8], strides = [1, 1]} : vector<8x128xf32> to vector<8x8xf32>
    %c0_22 = arith.constant 0 : index
    %c161 = arith.constant 161 : index
    %37 = vector.load %arg8[%c0_22, %c161] : memref<8x384xf32, #tpu.memory_space<vmem>>, vector<8x8xf32>
    tpu.vector_store %arg8[%c0_22, %c161], %36 {strides = array<i32>} : memref<8x384xf32, #tpu.memory_space<vmem>>, vector<8x8xf32>,
    %38 = vector.extract_strided_slice %7 {offsets = [0, 112], sizes = [8, 8], strides = [1, 1]} : vector<8x128xf32> to vector<8x8xf32>
    %c0_23 = arith.constant 0 : index
    %c171 = arith.constant 171 : index
    %39 = vector.load %arg8[%c0_23, %c171] : memref<8x384xf32, #tpu.memory_space<vmem>>, vector<8x8xf32>
    tpu.vector_store %arg8[%c0_23, %c171], %38 {strides = array<i32>} : memref<8x384xf32, #tpu.memory_space<vmem>>, vector<8x8xf32>,
    %40 = vector.extract_strided_slice %7 {offsets = [0, 120], sizes = [8, 8], strides = [1, 1]} : vector<8x128xf32> to vector<8x8xf32>
    %c0_24 = arith.constant 0 : index
    %c181 = arith.constant 181 : index
    %41 = vector.load %arg8[%c0_24, %c181] : memref<8x384xf32, #tpu.memory_space<vmem>>, vector<8x8xf32>
    tpu.vector_store %arg8[%c0_24, %c181], %40 {strides = array<i32>} : memref<8x384xf32, #tpu.memory_space<vmem>>, vector<8x8xf32>,
    %c0_25 = arith.constant 0 : index
    %c0_26 = arith.constant 0 : index
    %42 = vector.load %arg8[%c0_25, %c0_26] : memref<8x384xf32, #tpu.memory_space<vmem>>, vector<8x256xf32>
    %c0_27 = arith.constant 0 : index
    %c1 = arith.constant 1 : index
    %43 = vector.load %arg8[%c0_27, %c1] : memref<8x384xf32, #tpu.memory_space<vmem>>, vector<8x256xf32>
    %c0_28 = arith.constant 0 : index
    %c2 = arith.constant 2 : index
    %44 = vector.load %arg8[%c0_28, %c2] : memref<8x384xf32, #tpu.memory_space<vmem>>, vector<8x256xf32>
    %c0_29 = arith.constant 0 : index
    %c10 = arith.constant 10 : index
    %45 = vector.load %arg8[%c0_29, %c10] : memref<8x384xf32, #tpu.memory_space<vmem>>, vector<8x256xf32>
    %c0_30 = arith.constant 0 : index
    %c11_31 = arith.constant 11 : index
    %46 = vector.load %arg8[%c0_30, %c11_31] : memref<8x384xf32, #tpu.memory_space<vmem>>, vector<8x256xf32>
    %c0_32 = arith.constant 0 : index
    %c12 = arith.constant 12 : index
    %47 = vector.load %arg8[%c0_32, %c12] : memref<8x384xf32, #tpu.memory_space<vmem>>, vector<8x256xf32>
    %c0_33 = arith.constant 0 : index
    %c20 = arith.constant 20 : index
    %48 = vector.load %arg8[%c0_33, %c20] : memref<8x384xf32, #tpu.memory_space<vmem>>, vector<8x256xf32>
    %c0_34 = arith.constant 0 : index
    %c21_35 = arith.constant 21 : index
    %49 = vector.load %arg8[%c0_34, %c21_35] : memref<8x384xf32, #tpu.memory_space<vmem>>, vector<8x256xf32>
    %c0_36 = arith.constant 0 : index
    %c22 = arith.constant 22 : index
    %50 = vector.load %arg8[%c0_36, %c22] : memref<8x384xf32, #tpu.memory_space<vmem>>, vector<8x256xf32>
    %51 = tpu.concatenate %42, %43, %44, %45, %46, %47, %48, %49, %50 in 0 : vector<8x256xf32>, vector<8x256xf32>, vector<8x256xf32>, vector<8x256xf32>, vector<8x256xf32>, vector<8x256xf32>, vector<8x256xf32>, vector<8x256xf32>, vector<8x256xf32> -> vector<72x256xf32>
    %c0_37 = arith.constant 0 : index
    %c0_38 = arith.constant 0 : index
    %52 = vector.load %arg4[%c0_37, %c0_38] : memref<8x72xbf16, #tpu.memory_space<vmem>>, vector<8x72xbf16>
    %53 = arith.truncf %51 : vector<72x256xf32> to vector<72x256xbf16>
    %cst_39 = arith.constant dense<0.000000e+00> : vector<8x256xf32>
    %54 = tpu.matmul %52, %53, %cst_39 {dimension_numbers = #tpu.dot_dimension_numbers<[1], [0], [0], [1], [0, 0, 1, 1], [], []>} : vector<8x72xbf16>, vector<72x256xbf16>, vector<8x256xf32> -> vector<8x256xf32>
    %c0_40 = arith.constant 0 : index
    %c0_41 = arith.constant 0 : index
    %55 = vector.load %arg5[%c0_40, %c0_41] : memref<8x1xf32, #tpu.memory_space<vmem>>, vector<8x1xf32>
    %56 = vector.broadcast %55 : vector<8x1xf32> to vector<8x256xf32>
    %57 = arith.addf %54, %56 : vector<8x256xf32>
    %c0_42 = arith.constant 0 : index
    %c0_43 = arith.constant 0 : index
    %58 = vector.load %arg6[%c0_42, %c0_43] : memref<8x256xf32, #tpu.memory_space<vmem>>, vector<8x256xf32>
    %59 = arith.addf %57, %58 : vector<8x256xf32>
    %cst_44 = arith.constant 0.000000e+00 : f32
    %60 = vector.broadcast %cst_44 : f32 to vector<8x256xf32>
    %61 = arith.maximumf %59, %60 : vector<8x256xf32>
    %c0_45 = arith.constant 0 : index
    %c0_46 = arith.constant 0 : index
    %62 = vector.load %arg7[%c0_45, %c0_46] : memref<8x256xf32, #tpu.memory_space<vmem>>, vector<8x256xf32>
    tpu.vector_store %arg7[%c0_45, %c0_46], %61 {strides = array<i32>} : memref<8x256xf32, #tpu.memory_space<vmem>>, vector<8x256xf32>,
    return
  }
  func.func @transform_0(%arg0: i32) -> (i32, i32) {
    %c0_i32 = arith.constant 0 : i32
    %c0_i32_0 = arith.constant 0 : i32
    %c0_i32_1 = arith.constant 0 : i32
    return %c0_i32, %c0_i32_0 : i32, i32
  }
  func.func @transform_1(%arg0: i32) -> (i32, i32) {
    %c0_i32 = arith.constant 0 : i32
    %c0_i32_0 = arith.constant 0 : i32
    %c0_i32_1 = arith.constant 0 : i32
    return %c0_i32, %c0_i32_0 : i32, i32
  }
  func.func @transform_2(%arg0: i32) -> (i32, i32) {
    %c0_i32 = arith.constant 0 : i32
    %c0_i32_0 = arith.constant 0 : i32
    %c0_i32_1 = arith.constant 0 : i32
    return %c0_i32, %c0_i32_0 : i32, i32
  }
  func.func @transform_3(%arg0: i32) -> (i32, i32) {
    %c0_i32 = arith.constant 0 : i32
    %c0_i32_0 = arith.constant 0 : i32
    %c0_i32_1 = arith.constant 0 : i32
    return %c0_i32, %c0_i32_0 : i32, i32
  }
  func.func @transform_4(%arg0: i32) -> (i32, i32) {
    %c0_i32 = arith.constant 0 : i32
    %c0_i32_0 = arith.constant 0 : i32
    %c0_i32_1 = arith.constant 0 : i32
    return %c0_i32, %c0_i32_0 : i32, i32
  }
  func.func @transform_5(%arg0: i32) -> (i32, i32) {
    %c0_i32 = arith.constant 0 : i32
    %c0_i32_0 = arith.constant 0 : i32
    %c0_i32_1 = arith.constant 0 : i32
    return %c0_i32, %c0_i32_0 : i32, i32
  }
  func.func @transform_6(%arg0: i32) -> (i32, i32) {
    %c0_i32 = arith.constant 0 : i32
    %c0_i32_0 = arith.constant 0 : i32
    %c0_i32_1 = arith.constant 0 : i32
    return %c0_i32, %c0_i32_0 : i32, i32
  }
}

</mosaic_0001>

<llo_original>
// kernel: tpu_custom_call.1
$region0: #{tpu_custom_call.1}
  #allocation0 [shape = 'u32[]', space=smem, size = 0x4, offset = 0x4, fixed_abs, tag = 'smem constant byte address 0x4 - core index']
  #allocation1 [shape = 'u32[72,128]{1,0:T(1,128)}', space=vmem, size = 0x9000, scoped, tag = 'internal scratch']
  #allocation2 [shape = 'f32[8,384]{1,0:T(8,128)}', space=vmem, size = 0x3000, scoped, tag = 'scratch operand']
  %s0 = inlined_call_operand.hbm [shape: bf16[36,128], index: 0, kind: input, shape index: {}]
  %s1 = inlined_call_operand.hbm [shape: bf16[8,36], index: 1, kind: input, shape index: {}]
  %s2 = inlined_call_operand.vmem [shape: f32[8,1], index: 2, kind: input, shape index: {}]
  %s3 = inlined_call_operand.hbm [shape: bf16[8,72], index: 3, kind: input, shape index: {}]
  %s4 = inlined_call_operand.vmem [shape: f32[8,1], index: 4, kind: input, shape index: {}]
  %s5 = inlined_call_operand.vmem [shape: f32[8,256], index: 5, kind: input, shape index: {}]
  %s6 = inlined_call_operand.hbm [shape: f32[8,256], index: 6, kind: output, shape index: {}]
  %s7 = sld [smem:[#allocation0]]
  $region46: #{tpu_custom_call.1} parent=0
    _
  %s9 = ssub.s32 1, %s7
  %s10 = scalar_select 0, %s9, %s7
  $region1: #{tpu_custom_call.1} parent=0
    #allocation3 [shape = 'u8[10240]{0}', space=vmem, size = 0x2800, scoped, tag = 'input window, operand 0, single buffered']
    #allocation4 [shape = 's32[1]{0}', space=sflag, size = 0x4, scoped, tag = 'scoped memory for tpu_custom_call.1']
    #allocation5 [shape = 's32[1]{0}', space=sflag, size = 0x4, scoped, tag = 'scoped memory for tpu_custom_call.1']
    #allocation6 [shape = 'u8[2048]{0}', space=vmem, size = 0x800, scoped, tag = 'input window, operand 1, single buffered']
    #allocation7 [shape = 's32[1]{0}', space=sflag, size = 0x4, scoped, tag = 'scoped memory for tpu_custom_call.1']
    #allocation8 [shape = 'u8[2048]{0}', space=vmem, size = 0x800, scoped, tag = 'input window, operand 3, single buffered']
    #allocation9 [shape = 'u8[8192]{0}', space=vmem, size = 0x2000, scoped, tag = 'output window, operand 0, single buffered']
    %11 = vsyncpa [#allocation4], 0
    %12 = vsyncpa [#allocation7], 0
    %13 = vsyncpa [#allocation5], 0
    // Predicated region
    $region2: #{tpu_custom_call.1} parent=1 // pred_check
      _
    $region3: #{tpu_custom_call.1} parent=1 // pred_check_branch
      %15 = sbr.rel (0) target = $region5
    $region4: #{tpu_custom_call.1} parent=1 // pred_region
      %17 = vsyncadd [#allocation4], 0
      %s18 = sshll.u32 %s0, 4
      %s19 = int_to_ptr.hbm [resolvable:$true] %s18
      %s20 = sshll.u32 [#allocation3], 4
      %s21 = int_to_ptr.vmem [resolvable:$true] %s20
      %26 = dma.hbm_to_vmem [thread:$0]  %s19, 320, %s21, [#allocation4], 64, 64, 4
    $region5: #{tpu_custom_call.1} parent=1 // pred_fallthru
      _
    // Predicated region
    $region6: #{tpu_custom_call.1} parent=1 // pred_check
      _
    $region7: #{tpu_custom_call.1} parent=1 // pred_check_branch
      %28 = sbr.rel (0) target = $region9
    $region8: #{tpu_custom_call.1} parent=1 // pred_region
      %30 = vsyncadd [#allocation7], 0
      %s32 = sshll.u32 %s1, 4
      %s33 = int_to_ptr.hbm [resolvable:$true] %s32
      %s34 = sshll.u32 [#allocation6], 4
      %s35 = int_to_ptr.vmem [resolvable:$true] %s34
      %37 = dma.hbm_to_vmem [thread:$0]  %s33, 64, %s35, [#allocation7]
    $region9: #{tpu_custom_call.1} parent=1 // pred_fallthru
      _
    // Predicated region
    $region10: #{tpu_custom_call.1} parent=1 // pred_check
      _
    $region11: #{tpu_custom_call.1} parent=1 // pred_check_branch
      %39 = sbr.rel (0) target = $region13
    $region12: #{tpu_custom_call.1} parent=1 // pred_region
      _
    $region13: #{tpu_custom_call.1} parent=1 // pred_fallthru
      _
    // Predicated region
    $region14: #{tpu_custom_call.1} parent=1 // pred_check
      _
    $region15: #{tpu_custom_call.1} parent=1 // pred_check_branch
      %41 = sbr.rel (0) target = $region17
    $region16: #{tpu_custom_call.1} parent=1 // pred_region
      %43 = vsyncadd [#allocation7], 0
      %s45 = sshll.u32 %s3, 4
      %s46 = int_to_ptr.hbm [resolvable:$true] %s45
      %s47 = sshll.u32 [#allocation8], 4
      %s48 = int_to_ptr.vmem [resolvable:$true] %s47
      %50 = dma.hbm_to_vmem [thread:$0]  %s46, 64, %s48, [#allocation7]
    $region17: #{tpu_custom_call.1} parent=1 // pred_fallthru
      _
    // Predicated region
    $region18: #{tpu_custom_call.1} parent=1 // pred_check
      _
    $region19: #{tpu_custom_call.1} parent=1 // pred_check_branch
      %52 = sbr.rel (0) target = $region21
    $region20: #{tpu_custom_call.1} parent=1 // pred_region
      _
    $region21: #{tpu_custom_call.1} parent=1 // pred_fallthru
      _
    // Predicated region
    $region22: #{tpu_custom_call.1} parent=1 // pred_check
      _
    $region23: #{tpu_custom_call.1} parent=1 // pred_check_branch
      %54 = sbr.rel (0) target = $region25
    $region24: #{tpu_custom_call.1} parent=1 // pred_region
      _
    $region25: #{tpu_custom_call.1} parent=1 // pred_fallthru
      _
    // Predicated region
    $region26: #{tpu_custom_call.1} parent=1 // pred_check
      _
    $region27: #{tpu_custom_call.1} parent=1 // pred_check_branch
      %56 = sbr.rel (0) target = $region29
    $region28: #{tpu_custom_call.1} parent=1 // pred_region
      %58 = dma.done [#allocation4], 320
    $region29: #{tpu_custom_call.1} parent=1 // pred_fallthru
      _
    // Predicated region
    $region30: #{tpu_custom_call.1} parent=1 // pred_check
      _
    $region31: #{tpu_custom_call.1} parent=1 // pred_check_branch
      %60 = sbr.rel (0) target = $region33
    $region32: #{tpu_custom_call.1} parent=1 // pred_region
      %62 = dma.done [#allocation7], 64
    $region33: #{tpu_custom_call.1} parent=1 // pred_fallthru
      _
    // Predicated region
    $region34: #{tpu_custom_call.1} parent=1 // pred_check
      _
    $region35: #{tpu_custom_call.1} parent=1 // pred_check_branch
      %64 = sbr.rel (0) target = $region37
    $region36: #{tpu_custom_call.1} parent=1 // pred_region
      %66 = dma.done [#allocation7], 64
    $region37: #{tpu_custom_call.1} parent=1 // pred_fallthru
      _
    %v68 = vld [vmem:[#allocation6] sm:$0xf]
    %v69 = vld [vmem:[#allocation3] sm:$0xf]
    %v70 = vld [vmem:[#allocation3 + $0x4] sm:$0xf]
    %v71 = vld [vmem:[#allocation3 + $0x8] sm:$0xf]
    %v72 = vld [vmem:[#allocation3 + $0xc] sm:$0xf]
    %v73 = vld [vmem:[#allocation3 + $0x10] sm:$0x3]
    %v74 = vld [vmem:[%s2] sm:$0xff]
    %76 = vset.pattern.permute.xlu0 0
    %77 = vperm.xlu0 %76, %v74
    %v78 = vpop.permute.xlu0 %77
    %v85 = vunpack.c.l.b16 %v69
    %v86 = vunpack.c.l.b16 %v70
    %v87 = vunpack.c.l.b16 %v71
    %v88 = vunpack.c.l.b16 %v72
    %v89 = vunpack.c.l.b16 %v73
    %v90 = vpack.c.b16 %v86, %v85
    %v91 = vpack.c.b16 %v88, %v87
    %v92 = vpack.c.b16 %v89, %v89
    %vm95 = vcmask 293888
    %v97 = vsel %vm95, %v68, 0
    %vm99 = vcmask 1041408
    %v101 = vsel %vm99, %v92, 0
    %103 = vmatpush.bf16.msra.mxu0 0
    %104 = vmatpush.bf16.msra.mxu0 0
    %105 = vmatpush.bf16.msra.mxu0 0
    %106 = vmatpush.bf16.msra.mxu0 0
    %107 = vmatpush.bf16.msra.mxu0 0
    %108 = vmatpush.bf16.msra.mxu0 %v101
    %109 = vmatpush.bf16.msra.mxu0 %v91
    %110 = vmatpush.bf16.msra.mxu0 %v90
    %111 = vmatmul.bf16.gmra.mxu0 %v97
    %v112 = vpop.f32.mrf.mxu0
    %v113 = vadd.f32 %v78, %v112
    %v114 = vpop.f32.mrf.mxu0
    %115 = vdwg.mxu0
    %v116 = vmax.f32 %v113, 0.0
    %117 = vst [vmem:[#allocation2] sm:$0xff] 0.0
    %118 = vst [vmem:[#allocation2 + $0x8] sm:$0xff] 0.0
    %119 = vst [vmem:[#allocation2 + $0x10] sm:$0xff] 0.0
    %121 = vrot.lane.b32.xlu0 %v116, 11
    %v122 = vpop.permute.xlu0 %121
    %vm124 = vcmask 154712
    %125 = vst.msk [vmem:[#allocation2] sm:$0xff] %vm124, %v122
    %126 = vrot.lane.b32.xlu0 %v116, 13
    %v127 = vpop.permute.xlu0 %126
    %vm129 = vcmask 236712
    %130 = vst.msk [vmem:[#allocation2] sm:$0xff] %vm129, %v127
    %131 = vrot.lane.b32.xlu0 %v116, 15
    %v132 = vpop.permute.xlu0 %131
    %vm134 = vcmask 318712
    %135 = vst.msk [vmem:[#allocation2] sm:$0xff] %vm134, %v132
    %136 = vrot.lane.b32.xlu0 %v116, 17
    %v137 = vpop.permute.xlu0 %136
    %vm139 = vcmask 400712
    %140 = vst.msk [vmem:[#allocation2] sm:$0xff] %vm139, %v137
    %141 = vrot.lane.b32.xlu0 %v116, 19
    %v142 = vpop.permute.xlu0 %141
    %vm144 = vcmask 482712
    %145 = vst.msk [vmem:[#allocation2] sm:$0xff] %vm144, %v142
    %146 = vrot.lane.b32.xlu0 %v116, 21
    %v147 = vpop.permute.xlu0 %146
    %vm149 = vcmask 564712
    %150 = vst.msk [vmem:[#allocation2] sm:$0xff] %vm149, %v147
    %151 = vrot.lane.b32.xlu0 %v116, 23
    %v152 = vpop.permute.xlu0 %151
    %vm154 = vcmask 646712
    %155 = vst.msk [vmem:[#allocation2] sm:$0xff] %vm154, %v152
    %156 = vrot.lane.b32.xlu0 %v116, 25
    %v157 = vpop.permute.xlu0 %156
    %vm159 = vcmask 728712
    %160 = vst.msk [vmem:[#allocation2] sm:$0xff] %vm159, %v157
    %161 = vrot.lane.b32.xlu0 %v116, 47
    %v162 = vpop.permute.xlu0 %161
    %vm164 = vcmask 974712
    %165 = vst.msk [vmem:[#allocation2] sm:$0xff] %vm164, %v162
    %166 = vrot.lane.b32.xlu0 %v116, 49
    %v167 = vpop.permute.xlu0 %166
    %vm169 = vcmask 1048520
    %170 = vst.msk [vmem:[#allocation2] sm:$0xff] %vm169, %v167
    %vm171 = vcmask 7168
    %172 = vst.msk [vmem:[#allocation2 + $0x8] sm:$0xff] %vm171, %v167
    %173 = vrot.lane.b32.xlu0 %v116, 51
    %v174 = vpop.permute.xlu0 %173
    %vm176 = vcmask 89112
    %177 = vst.msk [vmem:[#allocation2 + $0x8] sm:$0xff] %vm176, %v174
    %178 = vrot.lane.b32.xlu0 %v116, 53
    %v179 = vpop.permute.xlu0 %178
    %vm181 = vcmask 171112
    %182 = vst.msk [vmem:[#allocation2 + $0x8] sm:$0xff] %vm181, %v179
    %183 = vrot.lane.b32.xlu0 %v116, 55
    %v184 = vpop.permute.xlu0 %183
    %vm186 = vcmask 253112
    %187 = vst.msk [vmem:[#allocation2 + $0x8] sm:$0xff] %vm186, %v184
    %188 = vrot.lane.b32.xlu0 %v116, 57
    %v189 = vpop.permute.xlu0 %188
    %vm191 = vcmask 335112
    %192 = vst.msk [vmem:[#allocation2 + $0x8] sm:$0xff] %vm191, %v189
    %193 = vrot.lane.b32.xlu0 %v116, 59
    %v194 = vpop.permute.xlu0 %193
    %vm196 = vcmask 417112
    %197 = vst.msk [vmem:[#allocation2 + $0x8] sm:$0xff] %vm196, %v194
    %198 = vrot.lane.b32.xlu0 %v116, 61
    %v199 = vpop.permute.xlu0 %198
    %vm201 = vcmask 499112
    %202 = vst.msk [vmem:[#allocation2 + $0x8] sm:$0xff] %vm201, %v199
    %v203 = vld [vmem:[#allocation2] sm:$0xff]
    %v204 = vld [vmem:[#allocation2 + $0x8] sm:$0xff]
    %v205 = vld [vmem:[#allocation2] sm:$0xff]
    %v206 = vld [vmem:[#allocation2 + $0x8] sm:$0xff]
    %v207 = vld [vmem:[#allocation2 + $0x10] sm:$0xff]
    %211 = vrot.lane.b32.xlu0 %v205, 127
    %v212 = vpop.permute.xlu0 %211
    %213 = vrot.lane.b32.xlu0 %v206, 127
    %v214 = vpop.permute.xlu0 %213
    %215 = vrot.lane.b32.xlu0 %v207, 127
    %v216 = vpop.permute.xlu0 %215
    %vm217 = vcmask 1039360
    %v218 = vsel %vm217, %v212, %v214
    %v219 = vsel %vm217, %v214, %v216
    %222 = vrot.lane.b32.xlu0 %v205, 126
    %v223 = vpop.permute.xlu0 %222
    %224 = vrot.lane.b32.xlu0 %v206, 126
    %v225 = vpop.permute.xlu0 %224
    %226 = vrot.lane.b32.xlu0 %v207, 126
    %v227 = vpop.permute.xlu0 %226
    %vm228 = vcmask 1031168
    %v229 = vsel %vm228, %v223, %v225
    %v230 = vsel %vm228, %v225, %v227
    %233 = vrot.lane.b32.xlu0 %v205, 118
    %v234 = vpop.permute.xlu0 %233
    %235 = vrot.lane.b32.xlu0 %v206, 118
    %v236 = vpop.permute.xlu0 %235
    %237 = vrot.lane.b32.xlu0 %v207, 118
    %v238 = vpop.permute.xlu0 %237
    %vm239 = vcmask 965632
    %v240 = vsel %vm239, %v234, %v236
    %v241 = vsel %vm239, %v236, %v238
    %244 = vrot.lane.b32.xlu0 %v205, 117
    %v245 = vpop.permute.xlu0 %244
    %246 = vrot.lane.b32.xlu0 %v206, 117
    %v247 = vpop.permute.xlu0 %246
    %248 = vrot.lane.b32.xlu0 %v207, 117
    %v249 = vpop.permute.xlu0 %248
    %vm250 = vcmask 957440
    %v251 = vsel %vm250, %v245, %v247
    %v252 = vsel %vm250, %v247, %v249
    %255 = vrot.lane.b32.xlu0 %v205, 116
    %v256 = vpop.permute.xlu0 %255
    %257 = vrot.lane.b32.xlu0 %v206, 116
    %v258 = vpop.permute.xlu0 %257
    %259 = vrot.lane.b32.xlu0 %v207, 116
    %v260 = vpop.permute.xlu0 %259
    %vm261 = vcmask 949248
    %v262 = vsel %vm261, %v256, %v258
    %v263 = vsel %vm261, %v258, %v260
    %266 = vrot.lane.b32.xlu0 %v205, 108
    %v267 = vpop.permute.xlu0 %266
    %268 = vrot.lane.b32.xlu0 %v206, 108
    %v269 = vpop.permute.xlu0 %268
    %270 = vrot.lane.b32.xlu0 %v207, 108
    %v271 = vpop.permute.xlu0 %270
    %vm272 = vcmask 883712
    %v273 = vsel %vm272, %v267, %v269
    %v274 = vsel %vm272, %v269, %v271
    %277 = vrot.lane.b32.xlu0 %v205, 107
    %v278 = vpop.permute.xlu0 %277
    %279 = vrot.lane.b32.xlu0 %v206, 107
    %v280 = vpop.permute.xlu0 %279
    %281 = vrot.lane.b32.xlu0 %v207, 107
    %v282 = vpop.permute.xlu0 %281
    %vm283 = vcmask 875520
    %v284 = vsel %vm283, %v278, %v280
    %v285 = vsel %vm283, %v280, %v282
    %288 = vrot.lane.b32.xlu0 %v205, 106
    %v289 = vpop.permute.xlu0 %288
    %290 = vrot.lane.b32.xlu0 %v206, 106
    %v291 = vpop.permute.xlu0 %290
    %292 = vrot.lane.b32.xlu0 %v207, 106
    %v293 = vpop.permute.xlu0 %292
    %vm294 = vcmask 867328
    %v295 = vsel %vm294, %v289, %v291
    %v296 = vsel %vm294, %v291, %v293
    %v299 = vld [vmem:[#allocation8] sm:$0xf]
    %v300 = vpack.c.bf16 %v218, %v203
    %v301 = vpack.c.bf16 %v219, %v204
    %v302 = vpack.c.bf16 %v240, %v229
    %v303 = vpack.c.bf16 %v241, %v230
    %v304 = vpack.c.bf16 %v262, %v251
    %v305 = vpack.c.bf16 %v263, %v252
    %v306 = vpack.c.bf16 %v284, %v273
    %v307 = vpack.c.bf16 %v285, %v274
    %v308 = vpack.c.bf16 %v295, %v295
    %v309 = vpack.c.bf16 %v296, %v296
    %v310 = vld [vmem:[%s4] sm:$0xff]
    %312 = vset.pattern.permute.xlu0 0
    %313 = vperm.xlu0 %312, %v310
    %v314 = vpop.permute.xlu0 %313
    %vm316 = vcmask 588800
    %v318 = vsel %vm316, %v299, 0
    %vm320 = vcmask 1043456
    %v322 = vsel %vm320, %v308, 0
    %v325 = vsel %vm320, %v309, 0
    %327 = vmatpush.bf16.msra.mxu0 0
    %328 = vmatpush.bf16.msra.mxu0 0
    %329 = vmatpush.bf16.msra.mxu0 0
    %330 = vmatpush.bf16.msra.mxu0 %v322
    %331 = vmatpush.bf16.msra.mxu0 %v306
    %332 = vmatpush.bf16.msra.mxu0 %v304
    %333 = vmatpush.bf16.msra.mxu0 %v302
    %334 = vmatpush.bf16.msra.mxu0 %v300
    %335 = vmatmul.bf16.gmra.mxu0 %v318
    %v336 = vpop.f32.mrf.mxu0
    %v337 = vadd.f32 %v314, %v336
    %v338 = vpop.f32.mrf.mxu0
    %339 = vdwg.mxu0
    %340 = vmatpush.bf16.msra.mxu0 0
    %341 = vmatpush.bf16.msra.mxu0 0
    %342 = vmatpush.bf16.msra.mxu0 0
    %343 = vmatpush.bf16.msra.mxu0 %v325
    %344 = vmatpush.bf16.msra.mxu0 %v307
    %345 = vmatpush.bf16.msra.mxu0 %v305
    %346 = vmatpush.bf16.msra.mxu0 %v303
    %347 = vmatpush.bf16.msra.mxu0 %v301
    %348 = vmatmul.bf16.gmra.mxu0 %v318
    %v349 = vpop.f32.mrf.mxu0
    %v350 = vadd.f32 %v314, %v349
    %v351 = vpop.f32.mrf.mxu0
    %352 = vdwg.mxu0
    %v353 = vld [vmem:[%s5] sm:$0xff]
    %v354 = vld [vmem:[%s5 + $0x8] sm:$0xff]
    %v355 = vadd.f32 %v337, %v353
    %v356 = vadd.f32 %v350, %v354
    %v357 = vmax.f32 %v355, 0.0
    %v358 = vmax.f32 %v356, 0.0
    %359 = vst [vmem:[#allocation9] sm:$0xff] %v357
    %360 = vst [vmem:[#allocation9 + $0x8] sm:$0xff] %v358
    // Predicated region
    $region38: #{tpu_custom_call.1} parent=1 // pred_check
      _
    $region39: #{tpu_custom_call.1} parent=1 // pred_check_branch
      %362 = sbr.rel (0) target = $region41
    $region40: #{tpu_custom_call.1} parent=1 // pred_region
      %364 = vsyncadd [#allocation5], 0
      %s366 = sshll.u32 [#allocation9], 4
      %s367 = int_to_ptr.vmem [resolvable:$true] %s366
      %s368 = sshll.u32 %s6, 4
      %s369 = int_to_ptr.hbm [resolvable:$true] %s368
      %371 = dma.vmem_to_hbm [thread:$0]  %s367, 256, %s369, [#allocation5]
    $region41: #{tpu_custom_call.1} parent=1 // pred_fallthru
      _
    // Predicated region
    $region42: #{tpu_custom_call.1} parent=1 // pred_check
      _
    $region43: #{tpu_custom_call.1} parent=1 // pred_check_branch
      %373 = sbr.rel (0) target = $region45
    $region44: #{tpu_custom_call.1} parent=1 // pred_region
      %375 = dma.done [#allocation5], 256
    $region45: #{tpu_custom_call.1} parent=1 // pred_fallthru
      _
    %376 = vsyncpa [#allocation4], 1
    %377 = vsyncpa [#allocation7], 1
    %378 = vsyncpa [#allocation5], 1

</llo_original>
